<compile_context>
chip_gen: v6e
topology: v6e:2x2x1
jax: 0.10.0
libtpu: 0.0.40
codegen_flags: <defaults>
</compile_context>

<pallas_src>
from itertools import product

import jax
import jax.numpy as jnp
from jax.experimental import pallas as pl
from jax.experimental.pallas import tpu as pltpu


# ----------------------------- Pallas kernel --------------------------------
def _scene_ord_kernel(packed_ref, out_ref):
    # packed_ref : (8 + VPAD, R_PAD) f32 -- single lane-dense VMEM input
    #   rows 0..2 : pred diff (dx, dy, dz), one sublane per xyz component
    #   rows 3..5 : gt   diff (dx, dy, dz)
    #   row  6    : 0/1 pair-selection mask (per row, tiled over batch)
    #   row  7    : zero spare
    #   rows 8..  : view vectors, xyz in lanes 0..2, zero elsewhere
    # out_ref    : (1, 1) f32 in SMEM -- sum of per-element losses.
    pdx = packed_ref[0:1, :]                 # (1, R_PAD)
    pdy = packed_ref[1:2, :]
    pdz = packed_ref[2:3, :]
    m = packed_ref[6:7, :]                   # (1, R_PAD) selection mask
    # Fold the selection mask into the gt components (3 single-vreg vmuls):
    # unselected / padded rows get gt_ord == 0 and therefore zero loss.
    gdx = packed_ref[3:4, :] * m
    gdy = packed_ref[4:5, :] * m
    gdz = packed_ref[5:6, :] * m

    v = packed_ref[8:, :]                    # (VPAD, R_PAD) view rows
    vx = v[:, 0:1]                           # (VPAD, 1)
    vy = v[:, 1:2]
    vz = v[:, 2:3]

    # Ordinal relations for every (view, row) pair: lane-dense (VPAD, R_PAD)
    # broadcast FMAs on the VPU (no MXU round-trip for a K=3 contraction).
    pred_ord = vx * pdx + vy * pdy + vz * pdz
    gt_ord = vx * gdx + vy * gdy + vz * gdz

    # relu(-sign(gt_ord) * pred_ord) == |pred_ord| exactly where signs disagree
    # (deviates only if gt_ord*pred_ord underflows to exactly 0).
    hinge = jnp.where(gt_ord * pred_ord < 0.0, jnp.abs(pred_ord), 0.0)
    # Matches torch.log(1.0 + relu(...)); hinge >= 0 so plain log(1+x) is safe.
    out_ref[0, 0] = jnp.sum(jnp.log(1.0 + hinge))


def _scene_ord_sum(packed):
    return pl.pallas_call(
        _scene_ord_kernel,
        out_shape=jax.ShapeDtypeStruct((1, 1), jnp.float32),
        in_specs=[pl.BlockSpec(memory_space=pltpu.MemorySpace.VMEM)],
        out_specs=pl.BlockSpec(memory_space=pltpu.MemorySpace.SMEM),
    )(packed)


# ------------------------------ JAX glue -------------------------------------
def sample_view_vectors(key, n_virtual_views=20):
    """JAX equivalent of the torch sampling: (n_virtual_views + 1, 3)."""
    k_theta, k_u = jax.random.split(key)
    theta = jax.random.uniform(k_theta, (n_virtual_views,), jnp.float32) * 2.0 * jnp.pi
    u = jax.random.uniform(k_u, (n_virtual_views,), jnp.float32)
    nv_x = jnp.sqrt(1.0 - u ** 2) * jnp.cos(theta)
    nv_y = jnp.sqrt(1.0 - u ** 2) * jnp.sin(theta)
    nv_z = u
    nv = jnp.stack([nv_x, nv_y, nv_z], axis=1)
    cam_vec = jnp.array([[0.0, 0.0, 1.0]], dtype=jnp.float32)
    return jnp.concatenate([cam_vec, nv], axis=0)


class SceneOrdLoss:
    def __init__(self, obj_rot=False):
        self.n_virtual_views = 40
        self.nviews = self.n_virtual_views + 1
        joints_idx = list(range(21))
        corners_idx = list(range(8)) if obj_rot else list(range(1))
        self.ho_pairs_idx = list(product(joints_idx, corners_idx))
        self.npairs = len(self.ho_pairs_idx)
        self.nsel = self.npairs // 3
        # static (compile-time) gather indices for the all-pairs diff
        self._idx_j = jnp.array([p[0] for p in self.ho_pairs_idx], dtype=jnp.int32)
        self._idx_c = jnp.array([p[1] for p in self.ho_pairs_idx], dtype=jnp.int32)

    def __call__(self, pred_joints, pred_corners, gt_joints, gt_corners, key):
        batch_size = pred_joints.shape[0]
        k_views, k_shuffle = jax.random.split(key)

        view_vecs = sample_view_vectors(k_views, self.n_virtual_views)  # (NVIEWS, 3)

        # TODO(synk): Python random.shuffle has no JAX/Pallas equivalent with the
        # same RNG stream; jax.random.permutation under an explicit key is used
        # (same distribution, different draws than the PyTorch module).
        sel_idx = jax.random.permutation(k_shuffle, self.npairs)[: self.nsel]
        mask = jnp.zeros((self.npairs,), jnp.float32).at[sel_idx].set(1.0)

        # All-pairs diffs (static gather).  The random 1/3 selection rides as a
        # 0/1 per-row mask in sublane 6 and is applied inside the kernel.
        pred_diff = pred_joints[:, self._idx_j, :] - pred_corners[:, self._idx_c, :]
        gt_diff = gt_joints[:, self._idx_j, :] - gt_corners[:, self._idx_c, :]

        nrows = batch_size * self.npairs
        r_pad = ((nrows + 127) // 128) * 128
        v_pad = ((self.nviews + 7) // 8) * 8

        pred_cols = pred_diff.reshape(nrows, 3).T.astype(jnp.float32)    # (3, R)
        gt_cols = gt_diff.reshape(nrows, 3).T.astype(jnp.float32)        # (3, R)
        mask_rows = jnp.tile(mask, batch_size)                           # (R,)

        # One packed lane-dense input => one DMA: diffs + mask on sublanes 0..7,
        # view vectors on sublanes 8.., zero padding everywhere else.
        packed = jnp.zeros((8 + v_pad, r_pad), jnp.float32)
        packed = packed.at[0:3, :nrows].set(pred_cols)
        packed = packed.at[3:6, :nrows].set(gt_cols)
        packed = packed.at[6, :nrows].set(mask_rows)
        packed = packed.at[8:8 + self.nviews, 0:3].set(view_vecs.astype(jnp.float32))

        loss_sum = _scene_ord_sum(packed)[0, 0]
        n_elems = batch_size * self.nsel * self.nviews   # true (unpadded) count
        return loss_sum / jnp.float32(n_elems)


# ------------------------------- demo ----------------------------------------
if __name__ == "__main__":
    key = jax.random.PRNGKey(0)
    k_pj, k_pc, k_gj, k_gc, k_loss = jax.random.split(key, 5)

    B = 2
    pred_joints = jax.random.normal(k_pj, (B, 21, 3), jnp.float32)
    pred_corners = jax.random.normal(k_pc, (B, 1, 3), jnp.float32)
    gt_joints = jax.random.normal(k_gj, (B, 21, 3), jnp.float32)
    gt_corners = jax.random.normal(k_gc, (B, 1, 3), jnp.float32)

    loss_mod = SceneOrdLoss(obj_rot=False)
    loss = loss_mod(pred_joints, pred_corners, gt_joints, gt_corners, k_loss)
    loss = jax.block_until_ready(loss)

    # reference (pure JAX) check of the kernel math
    def _ref(pj, pc, gj, gc, key):
        k_views, k_shuffle = jax.random.split(key)
        vv = sample_view_vectors(k_views, loss_mod.n_virtual_views)
        sel = jax.random.permutation(k_shuffle, loss_mod.npairs)[: loss_mod.nsel]
        idx_j = loss_mod._idx_j[sel]
        idx_c = loss_mod._idx_c[sel]
        pd = pj[:, idx_j, :] - pc[:, idx_c, :]
        gd = gj[:, idx_j, :] - gc[:, idx_c, :]
        p_ord = jnp.einsum("bpd,vd->bpv", pd, vv)
        g_ord = jnp.einsum("bpd,vd->bpv", gd, vv)
        return jnp.mean(jnp.log(1.0 + jnp.maximum(-jnp.sign(g_ord) * p_ord, 0.0)))

    ref = _ref(pred_joints, pred_corners, gt_joints, gt_corners, k_loss)
    assert jnp.allclose(loss, ref, atol=1e-5, rtol=1e-5), (loss, ref)

    print("KERNEL_OK")
</pallas_src>

<mosaic_0001>
module attributes {stable_mosaic.version = 11 : i64} {
  func.func @_scene_ord_kernel(%arg0: memref<56x128xf32, #tpu.memory_space<vmem>>, %arg1: memref<1x1xf32, #tpu.memory_space<smem>>) attributes {dimension_semantics = [], scalar_prefetch = 0 : i64, scratch_operands = 0 : i64, tpu.core_type = #tpu.core_type<tc>} {
    %c0 = arith.constant 0 : index
    %c0_0 = arith.constant 0 : index
    %0 = vector.load %arg0[%c0, %c0_0] : memref<56x128xf32, #tpu.memory_space<vmem>>, vector<1x128xf32>
    %c1 = arith.constant 1 : index
    %c0_1 = arith.constant 0 : index
    %1 = vector.load %arg0[%c1, %c0_1] : memref<56x128xf32, #tpu.memory_space<vmem>>, vector<1x128xf32>
    %c2 = arith.constant 2 : index
    %c0_2 = arith.constant 0 : index
    %2 = vector.load %arg0[%c2, %c0_2] : memref<56x128xf32, #tpu.memory_space<vmem>>, vector<1x128xf32>
    %c6 = arith.constant 6 : index
    %c0_3 = arith.constant 0 : index
    %3 = vector.load %arg0[%c6, %c0_3] : memref<56x128xf32, #tpu.memory_space<vmem>>, vector<1x128xf32>
    %c3 = arith.constant 3 : index
    %c0_4 = arith.constant 0 : index
    %4 = vector.load %arg0[%c3, %c0_4] : memref<56x128xf32, #tpu.memory_space<vmem>>, vector<1x128xf32>
    %5 = arith.mulf %4, %3 : vector<1x128xf32>
    %c4 = arith.constant 4 : index
    %c0_5 = arith.constant 0 : index
    %6 = vector.load %arg0[%c4, %c0_5] : memref<56x128xf32, #tpu.memory_space<vmem>>, vector<1x128xf32>
    %7 = arith.mulf %6, %3 : vector<1x128xf32>
    %c5 = arith.constant 5 : index
    %c0_6 = arith.constant 0 : index
    %8 = vector.load %arg0[%c5, %c0_6] : memref<56x128xf32, #tpu.memory_space<vmem>>, vector<1x128xf32>
    %9 = arith.mulf %8, %3 : vector<1x128xf32>
    %c8 = arith.constant 8 : index
    %c0_7 = arith.constant 0 : index
    %10 = vector.load %arg0[%c8, %c0_7] : memref<56x128xf32, #tpu.memory_space<vmem>>, vector<48x128xf32>
    %11 = vector.extract_strided_slice %10 {offsets = [0, 0], sizes = [48, 1], strides = [1, 1]} : vector<48x128xf32> to vector<48x1xf32>
    %12 = vector.extract_strided_slice %10 {offsets = [0, 1], sizes = [48, 1], strides = [1, 1]} : vector<48x128xf32> to vector<48x1xf32>
    %13 = vector.extract_strided_slice %10 {offsets = [0, 2], sizes = [48, 1], strides = [1, 1]} : vector<48x128xf32> to vector<48x1xf32>
    %14 = vector.broadcast %11 : vector<48x1xf32> to vector<48x128xf32>
    %15 = vector.broadcast %0 : vector<1x128xf32> to vector<48x128xf32>
    %16 = arith.mulf %14, %15 : vector<48x128xf32>
    %17 = vector.broadcast %12 : vector<48x1xf32> to vector<48x128xf32>
    %18 = vector.broadcast %1 : vector<1x128xf32> to vector<48x128xf32>
    %19 = arith.mulf %17, %18 : vector<48x128xf32>
    %20 = arith.addf %16, %19 : vector<48x128xf32>
    %21 = vector.broadcast %13 : vector<48x1xf32> to vector<48x128xf32>
    %22 = vector.broadcast %2 : vector<1x128xf32> to vector<48x128xf32>
    %23 = arith.mulf %21, %22 : vector<48x128xf32>
    %24 = arith.addf %20, %23 : vector<48x128xf32>
    %25 = vector.broadcast %11 : vector<48x1xf32> to vector<48x128xf32>
    %26 = vector.broadcast %5 : vector<1x128xf32> to vector<48x128xf32>
    %27 = arith.mulf %25, %26 : vector<48x128xf32>
    %28 = vector.broadcast %12 : vector<48x1xf32> to vector<48x128xf32>
    %29 = vector.broadcast %7 : vector<1x128xf32> to vector<48x128xf32>
    %30 = arith.mulf %28, %29 : vector<48x128xf32>
    %31 = arith.addf %27, %30 : vector<48x128xf32>
    %32 = vector.broadcast %13 : vector<48x1xf32> to vector<48x128xf32>
    %33 = vector.broadcast %9 : vector<1x128xf32> to vector<48x128xf32>
    %34 = arith.mulf %32, %33 : vector<48x128xf32>
    %35 = arith.addf %31, %34 : vector<48x128xf32>
    %36 = arith.mulf %35, %24 : vector<48x128xf32>
    %cst = arith.constant 0.000000e+00 : f32
    %37 = vector.broadcast %cst : f32 to vector<48x128xf32>
    %38 = arith.cmpf olt, %36, %37 : vector<48x128xf32>
    %39 = math.absf %24 : vector<48x128xf32>
    %cst_8 = arith.constant 0.000000e+00 : f32
    %40 = vector.broadcast %cst_8 : f32 to vector<48x128xf32>
    %41 = arith.select %38, %39, %40 : vector<48x128xi1>, vector<48x128xf32>
    %cst_9 = arith.constant 1.000000e+00 : f32
    %42 = vector.broadcast %cst_9 : f32 to vector<48x128xf32>
    %43 = arith.addf %42, %41 : vector<48x128xf32>
    %44 = math.log %43 : vector<48x128xf32>
    %45 = vector.shape_cast %44 : vector<48x128xf32> to vector<1x48x128xf32>
    %cst_10 = arith.constant dense<0.000000e+00> : vector<1xf32>
    %46 = vector.multi_reduction <add>, %45, %cst_10 [1, 2] : vector<1x48x128xf32> to vector<1xf32>
    %47 = vector.shape_cast %46 : vector<1xf32> to vector<1x1x1xf32>
    %48 = vector.extract %47[0, 0, 0] : f32 from vector<1x1x1xf32>
    %c0_11 = arith.constant 0 : index
    %c0_12 = arith.constant 0 : index
    %49 = memref.load %arg1[%c0_11, %c0_12] : memref<1x1xf32, #tpu.memory_space<smem>>
    memref.store %48, %arg1[%c0_11, %c0_12] : memref<1x1xf32, #tpu.memory_space<smem>>
    return
  }
}

</mosaic_0001>

<llo_original>
// kernel: tpu_custom_call.1
$region0: #{tpu_custom_call.1}
  #allocation0 [shape = 'u32[]', space=smem, size = 0x4, offset = 0x4, fixed_abs, tag = 'smem constant byte address 0x4 - core index']
  #allocation1 [shape = 'u32[144,128]{1,0:T(1,128)}', space=vmem, size = 0x12000, scoped, tag = 'internal scratch']
  %s0 = inlined_call_operand.hbm [shape: f32[56,128], index: 0, kind: input, shape index: {}]
  %s1 = inlined_call_operand.hbm [shape: f32[1,1], index: 1, kind: output, shape index: {}]
  %s2 = sld [smem:[#allocation0]]
  $region18: #{tpu_custom_call.1} parent=0
    _
  %s4 = ssub.s32 1, %s2
  %s5 = scalar_select 0, %s4, %s2
  $region1: #{tpu_custom_call.1} parent=0
    #allocation2 [shape = 'u8[28672]{0}', space=vmem, size = 0x7000, scoped, tag = 'input window, operand 0, single buffered']
    #allocation3 [shape = 's32[1]{0}', space=sflag, size = 0x4, scoped, tag = 'scoped memory for tpu_custom_call.1']
    #allocation4 [shape = 's32[1]{0}', space=sflag, size = 0x4, scoped, tag = 'scoped memory for tpu_custom_call.1']
    #allocation5 [shape = 'u8[512]{0}', space=smem, size = 0x200, scoped, tag = 'output window, operand 0, single buffered']
    %6 = vsyncpa [#allocation3], 0
    %7 = vsyncpa [#allocation4], 0
    // Predicated region
    $region2: #{tpu_custom_call.1} parent=1 // pred_check
      _
    $region3: #{tpu_custom_call.1} parent=1 // pred_check_branch
      %9 = sbr.rel (0) target = $region5
    $region4: #{tpu_custom_call.1} parent=1 // pred_region
      %s11 = ssub.s32 896, 896
      %12 = vsyncadd [#allocation3], %s11
      %s13 = sshll.u32 [#allocation2], 4
      %s14 = int_to_ptr.vmem [resolvable:$true] %s13
      %19 = dma.hbm_to_vmem [thread:$0]  %s0, 896, %s14, [#allocation3], 128, 128, 8
    $region5: #{tpu_custom_call.1} parent=1 // pred_fallthru
      _
    // Predicated region
    $region6: #{tpu_custom_call.1} parent=1 // pred_check
      _
    $region7: #{tpu_custom_call.1} parent=1 // pred_check_branch
      %21 = sbr.rel (0) target = $region9
    $region8: #{tpu_custom_call.1} parent=1 // pred_region
      %22 = dma.done [#allocation3], 896
    $region9: #{tpu_custom_call.1} parent=1 // pred_fallthru
      _
    %v23 = vld [vmem:[#allocation2] sm:$0x1]
    %v24 = vld [vmem:[#allocation2 + $0x1] sm:$0x1]
    %v25 = vld [vmem:[#allocation2 + $0x2] sm:$0x1]
    %v26 = vld [vmem:[#allocation2 + $0x6] sm:$0x1]
    %v27 = vld [vmem:[#allocation2 + $0x3] sm:$0x1]
    %v28 = vmul.f32 %v27, %v26
    %v29 = vld [vmem:[#allocation2 + $0x4] sm:$0x1]
    %v30 = vmul.f32 %v29, %v26
    %v31 = vld [vmem:[#allocation2 + $0x5] sm:$0x1]
    %v32 = vmul.f32 %v31, %v26
    %v33 = vld [vmem:[#allocation2 + $0x8] sm:$0xff]
    %v34 = vld [vmem:[#allocation2 + $0x10] sm:$0xff]
    %v35 = vld [vmem:[#allocation2 + $0x18] sm:$0xff]
    %v36 = vld [vmem:[#allocation2 + $0x20] sm:$0xff]
    %v37 = vld [vmem:[#allocation2 + $0x28] sm:$0xff]
    %v38 = vld [vmem:[#allocation2 + $0x30] sm:$0xff]
    %40 = vset.pattern.permute.xlu0 0
    %41 = vperm.xlu0 %40, %v33
    %v42 = vpop.permute.xlu0 %41
    %45 = vset.pattern.permute.xlu0 0
    %46 = vperm.xlu0 %45, %v34
    %v47 = vpop.permute.xlu0 %46
    %50 = vset.pattern.permute.xlu0 0
    %51 = vperm.xlu0 %50, %v35
    %v52 = vpop.permute.xlu0 %51
    %55 = vset.pattern.permute.xlu0 0
    %56 = vperm.xlu0 %55, %v36
    %v57 = vpop.permute.xlu0 %56
    %60 = vset.pattern.permute.xlu0 0
    %61 = vperm.xlu0 %60, %v37
    %v62 = vpop.permute.xlu0 %61
    %65 = vset.pattern.permute.xlu0 0
    %66 = vperm.xlu0 %65, %v38
    %v67 = vpop.permute.xlu0 %66
    %v69 = vlaneseq
    %v70 = vshrl.u32 %v69, 7
    %v71 = vsub.s32 0, %v70
    %v72 = vrot.slane %v23, %v71
    %v73 = vmul.f32 %v42, %v72
    %v74 = vmul.f32 %v47, %v72
    %v75 = vmul.f32 %v52, %v72
    %v76 = vmul.f32 %v57, %v72
    %v77 = vmul.f32 %v62, %v72
    %v78 = vmul.f32 %v67, %v72
    %79 = vset.pattern.permute.xlu0 1
    %80 = vperm.xlu0 %79, %v33
    %v81 = vpop.permute.xlu0 %80
    %83 = vset.pattern.permute.xlu0 1
    %84 = vperm.xlu0 %83, %v34
    %v85 = vpop.permute.xlu0 %84
    %87 = vset.pattern.permute.xlu0 1
    %88 = vperm.xlu0 %87, %v35
    %v89 = vpop.permute.xlu0 %88
    %91 = vset.pattern.permute.xlu0 1
    %92 = vperm.xlu0 %91, %v36
    %v93 = vpop.permute.xlu0 %92
    %95 = vset.pattern.permute.xlu0 1
    %96 = vperm.xlu0 %95, %v37
    %v97 = vpop.permute.xlu0 %96
    %99 = vset.pattern.permute.xlu0 1
    %100 = vperm.xlu0 %99, %v38
    %v101 = vpop.permute.xlu0 %100
    %v103 = vlaneseq
    %v104 = vshrl.u32 %v103, 7
    %v105 = vsub.s32 0, %v104
    %v106 = vrot.slane %v24, %v105
    %v107 = vmul.f32 %v81, %v106
    %v108 = vmul.f32 %v85, %v106
    %v109 = vmul.f32 %v89, %v106
    %v110 = vmul.f32 %v93, %v106
    %v111 = vmul.f32 %v97, %v106
    %v112 = vmul.f32 %v101, %v106
    %v113 = vadd.f32 %v73, %v107
    %v114 = vadd.f32 %v74, %v108
    %v115 = vadd.f32 %v75, %v109
    %v116 = vadd.f32 %v76, %v110
    %v117 = vadd.f32 %v77, %v111
    %v118 = vadd.f32 %v78, %v112
    %119 = vset.pattern.permute.xlu0 2
    %120 = vperm.xlu0 %119, %v33
    %v121 = vpop.permute.xlu0 %120
    %123 = vset.pattern.permute.xlu0 2
    %124 = vperm.xlu0 %123, %v34
    %v125 = vpop.permute.xlu0 %124
    %127 = vset.pattern.permute.xlu0 2
    %128 = vperm.xlu0 %127, %v35
    %v129 = vpop.permute.xlu0 %128
    %131 = vset.pattern.permute.xlu0 2
    %132 = vperm.xlu0 %131, %v36
    %v133 = vpop.permute.xlu0 %132
    %135 = vset.pattern.permute.xlu0 2
    %136 = vperm.xlu0 %135, %v37
    %v137 = vpop.permute.xlu0 %136
    %139 = vset.pattern.permute.xlu0 2
    %140 = vperm.xlu0 %139, %v38
    %v141 = vpop.permute.xlu0 %140
    %v143 = vlaneseq
    %v144 = vshrl.u32 %v143, 7
    %v145 = vsub.s32 0, %v144
    %v146 = vrot.slane %v25, %v145
    %v147 = vmul.f32 %v121, %v146
    %v148 = vmul.f32 %v125, %v146
    %v149 = vmul.f32 %v129, %v146
    %v150 = vmul.f32 %v133, %v146
    %v151 = vmul.f32 %v137, %v146
    %v152 = vmul.f32 %v141, %v146
    %v153 = vadd.f32 %v113, %v147
    %v154 = vadd.f32 %v114, %v148
    %v155 = vadd.f32 %v115, %v149
    %v156 = vadd.f32 %v116, %v150
    %v157 = vadd.f32 %v117, %v151
    %v158 = vadd.f32 %v118, %v152
    %v159 = vlaneseq
    %v160 = vshrl.u32 %v159, 7
    %v161 = vsub.s32 0, %v160
    %v162 = vrot.slane %v28, %v161
    %v163 = vmul.f32 %v42, %v162
    %v164 = vmul.f32 %v47, %v162
    %v165 = vmul.f32 %v52, %v162
    %v166 = vmul.f32 %v57, %v162
    %v167 = vmul.f32 %v62, %v162
    %v168 = vmul.f32 %v67, %v162
    %v169 = vlaneseq
    %v170 = vshrl.u32 %v169, 7
    %v171 = vsub.s32 0, %v170
    %v172 = vrot.slane %v30, %v171
    %v173 = vmul.f32 %v81, %v172
    %v174 = vmul.f32 %v85, %v172
    %v175 = vmul.f32 %v89, %v172
    %v176 = vmul.f32 %v93, %v172
    %v177 = vmul.f32 %v97, %v172
    %v178 = vmul.f32 %v101, %v172
    %v179 = vadd.f32 %v163, %v173
    %v180 = vadd.f32 %v164, %v174
    %v181 = vadd.f32 %v165, %v175
    %v182 = vadd.f32 %v166, %v176
    %v183 = vadd.f32 %v167, %v177
    %v184 = vadd.f32 %v168, %v178
    %v185 = vlaneseq
    %v186 = vshrl.u32 %v185, 7
    %v187 = vsub.s32 0, %v186
    %v188 = vrot.slane %v32, %v187
    %v189 = vmul.f32 %v121, %v188
    %v190 = vmul.f32 %v125, %v188
    %v191 = vmul.f32 %v129, %v188
    %v192 = vmul.f32 %v133, %v188
    %v193 = vmul.f32 %v137, %v188
    %v194 = vmul.f32 %v141, %v188
    %v195 = vadd.f32 %v179, %v189
    %v196 = vadd.f32 %v180, %v190
    %v197 = vadd.f32 %v181, %v191
    %v198 = vadd.f32 %v182, %v192
    %v199 = vadd.f32 %v183, %v193
    %v200 = vadd.f32 %v184, %v194
    %v201 = vmul.f32 %v195, %v153
    %v202 = vmul.f32 %v196, %v154
    %v203 = vmul.f32 %v197, %v155
    %v204 = vmul.f32 %v198, %v156
    %v205 = vmul.f32 %v199, %v157
    %v206 = vmul.f32 %v200, %v158
    %vm207 = vcmp.lt.f32.partialorder %v201, 0.0
    %vm208 = vcmp.lt.f32.partialorder %v202, 0.0
    %vm209 = vcmp.lt.f32.partialorder %v203, 0.0
    %vm210 = vcmp.lt.f32.partialorder %v204, 0.0
    %vm211 = vcmp.lt.f32.partialorder %v205, 0.0
    %vm212 = vcmp.lt.f32.partialorder %v206, 0.0
    %v213 = vand.u32 2147483647, %v153
    %v214 = vand.u32 2147483647, %v154
    %v215 = vand.u32 2147483647, %v155
    %v216 = vand.u32 2147483647, %v156
    %v217 = vand.u32 2147483647, %v157
    %v218 = vand.u32 2147483647, %v158
    %v219 = vsel %vm207, %v213, 0.0
    %v220 = vsel %vm208, %v214, 0.0
    %v221 = vsel %vm209, %v215, 0.0
    %v222 = vsel %vm210, %v216, 0.0
    %v223 = vsel %vm211, %v217, 0.0
    %v224 = vsel %vm212, %v218, 0.0
    %v225 = vadd.f32 %v219, 1.0
    %v226 = vadd.f32 %v220, 1.0
    %v227 = vadd.f32 %v221, 1.0
    %v228 = vadd.f32 %v222, 1.0
    %v229 = vadd.f32 %v223, 1.0
    %v230 = vadd.f32 %v224, 1.0
    %v231 = vlog2.pop %v225
    %v232 = vmul.f32 %v231, 0.6931472
    %v233 = vlog2.pop %v226
    %v234 = vmul.f32 %v233, 0.6931472
    %v235 = vlog2.pop %v227
    %v236 = vmul.f32 %v235, 0.6931472
    %v237 = vlog2.pop %v228
    %v238 = vmul.f32 %v237, 0.6931472
    %v239 = vlog2.pop %v229
    %v240 = vmul.f32 %v239, 0.6931472
    %v241 = vlog2.pop %v230
    %v242 = vmul.f32 %v241, 0.6931472
    %v243 = vadd.f32 %v232, %v234
    %v244 = vadd.f32 %v243, %v236
    %v245 = vadd.f32 %v244, %v238
    %v246 = vadd.f32 %v245, %v240
    %v247 = vadd.f32 %v246, %v242
    %248 = vadd.xlane.f32.xlu0 %v247
    %v249 = vpop.xlane.xlu0 %248
    %v250 = vrot.slane %v249, 4
    %v251 = vadd.f32 %v249, %v250
    %v252 = vrot.slane %v251, 2
    %v253 = vadd.f32 %v251, %v252
    %v254 = vrot.slane %v253, 1
    %v255 = vadd.f32 %v253, %v254
    %s256 = vtos %v255
    %s257 = scalar_lea.smem [#allocation5], 0
    %258 = sst [smem:[%s257]] %s256
    // Predicated region
    $region10: #{tpu_custom_call.1} parent=1 // pred_check
      _
    $region11: #{tpu_custom_call.1} parent=1 // pred_check_branch
      %260 = sbr.rel (0) target = $region13
    $region12: #{tpu_custom_call.1} parent=1 // pred_region
      %s262 = ssub.s32 16, 16
      %263 = vsyncadd [#allocation4], %s262
      %266 = dma.smem_to_hbm [#allocation5], 16, %s1, [#allocation4]
    $region13: #{tpu_custom_call.1} parent=1 // pred_fallthru
      _
    // Predicated region
    $region14: #{tpu_custom_call.1} parent=1 // pred_check
      _
    $region15: #{tpu_custom_call.1} parent=1 // pred_check_branch
      %268 = sbr.rel (0) target = $region17
    $region16: #{tpu_custom_call.1} parent=1 // pred_region
      %269 = dma.done [#allocation4], 16
    $region17: #{tpu_custom_call.1} parent=1 // pred_fallthru
      _
    %270 = sfence
    %271 = vsyncpa [#allocation3], 1
    %272 = vsyncpa [#allocation4], 1

</llo_original>
